<compile_context>
chip_gen: v5e
topology: v5e:2x2
jax: 0.10.0
libtpu: 0.0.40
codegen_flags: <defaults>
</compile_context>

<pallas_src>
import functools

import jax
import jax.numpy as jnp
from jax.experimental import pallas as pl
from jax.experimental.pallas import tpu as pltpu


def _round_up(x, m):
    return ((x + m - 1) // m) * m


# ------------------- tiled matmul + bias (projection & vocab head) ----------
def _matmul_bias_kernel(x_ref, w_ref, b_ref, o_ref):
    o_ref[...] = (jnp.dot(x_ref[...], w_ref[...],
                          preferred_element_type=jnp.float32)
                  + b_ref[...]).astype(o_ref.dtype)


def matmul_bias(x, w, b, *, tn=256, tm=512):
    """x (N, K) @ w (K, M) + b (1, M) -> (N, M); tiled over rows and cols.

    K is kept whole (it is E or H, small/medium). Rows are padded to a sublane
    multiple, cols to a lane multiple, so all stores are lane-dense.
    """
    N, K = x.shape
    M = w.shape[1]
    tn = min(tn, _round_up(N, 8))
    tm = min(tm, _round_up(M, 128))
    Np, Mp = _round_up(N, tn), _round_up(M, tm)
    if Np != N:
        x = jnp.pad(x, ((0, Np - N), (0, 0)))
    if Mp != M:
        w = jnp.pad(w, ((0, 0), (0, Mp - M)))
        b = jnp.pad(b, ((0, 0), (0, Mp - M)))

    out = pl.pallas_call(
        _matmul_bias_kernel,
        out_shape=jax.ShapeDtypeStruct((Np, Mp), jnp.float32),
        grid_spec=pltpu.PrefetchScalarGridSpec(
            num_scalar_prefetch=0,
            grid=(Np // tn, Mp // tm),
            in_specs=[
                pl.BlockSpec((tn, K), lambda i, j: (i, 0)),
                pl.BlockSpec((K, tm), lambda i, j: (0, j)),
                pl.BlockSpec((1, tm), lambda i, j: (0, j)),
            ],
            out_specs=pl.BlockSpec((tn, tm), lambda i, j: (i, j)),
        ),
        compiler_params=pltpu.CompilerParams(
            dimension_semantics=("parallel", "parallel")),
    )(x, w, b)
    if (Np, Mp) != (N, M):
        out = out[:N, :M]
    return out


# ----------------------------- LSTM recurrence ------------------------------
def _lstm_kernel(gx_ref, h0_ref, c0_ref, whh_ref,
                 hseq_ref, hT_ref, cT_ref,
                 h_sc, c_sc, *, hidden_size, chunk, seq_len, masked):
    H = hidden_size
    tc = pl.program_id(0)

    @pl.when(tc == 0)
    def _():
        h_sc[...] = h0_ref[...]
        c_sc[...] = c0_ref[...]

    whh = whh_ref[...]            # (H, 4H), VMEM-resident across the whole grid
    base = tc * chunk

    def step(s, carry):
        h, c = carry
        # gates_x already contains x_t @ W_ih^T + b_ih + b_hh (hoisted matmul).
        g = gx_ref[s] + jnp.dot(h, whh, preferred_element_type=jnp.float32)
        # TODO(synk): for H a multiple of 128 these gate slices are lane-aligned;
        # for small H Mosaic lowers the sub-lane slicing itself.
        i = jax.nn.sigmoid(g[:, 0 * H:1 * H])
        f = jax.nn.sigmoid(g[:, 1 * H:2 * H])
        gg = jnp.tanh(g[:, 2 * H:3 * H])
        o = jax.nn.sigmoid(g[:, 3 * H:4 * H])
        c_new = f * c + i * gg
        h_new = o * jnp.tanh(c_new)
        hseq_ref[s] = h_new
        if masked:  # only emitted when T was padded to a chunk multiple
            valid = (base + s) < seq_len
            h_new = jnp.where(valid, h_new, h)
            c_new = jnp.where(valid, c_new, c)
        return (h_new, c_new)

    hT, cT = jax.lax.fori_loop(0, chunk, step, (h_sc[...], c_sc[...]),
                               unroll=True if chunk <= 8 else 2)
    h_sc[...] = hT
    c_sc[...] = cT

    @pl.when(tc == pl.num_programs(0) - 1)
    def _():
        hT_ref[...] = hT
        cT_ref[...] = cT


def lstm_recurrence(gates_x, h0, c0, w_hh_t, *, chunk=32):
    """gates_x: (T, B, 4H) precomputed input projection (time-major).
    Returns (h_seq (T,B,H), hT (B,H), cT (B,H))."""
    T, B, G = gates_x.shape
    H = h0.shape[-1]
    chunk = min(chunk, T)
    T_pad = _round_up(T, chunk)
    masked = T_pad != T
    if masked:
        gates_x = jnp.pad(gates_x, ((0, T_pad - T), (0, 0), (0, 0)))

    kernel = functools.partial(_lstm_kernel, hidden_size=H, chunk=chunk,
                               seq_len=T, masked=masked)

    out_shapes = (
        jax.ShapeDtypeStruct((T_pad, B, H), jnp.float32),   # h per step
        jax.ShapeDtypeStruct((B, H), jnp.float32),          # final h
        jax.ShapeDtypeStruct((B, H), jnp.float32),          # final c
    )

    grid_spec = pltpu.PrefetchScalarGridSpec(
        num_scalar_prefetch=0,
        grid=(T_pad // chunk,),
        in_specs=[
            pl.BlockSpec((chunk, B, G), lambda t: (t, 0, 0)),   # gates chunk
            pl.BlockSpec((B, H), lambda t: (0, 0)),             # h0
            pl.BlockSpec((B, H), lambda t: (0, 0)),             # c0
            pl.BlockSpec((H, G), lambda t: (0, 0)),             # W_hh^T
        ],
        out_specs=[
            pl.BlockSpec((chunk, B, H), lambda t: (t, 0, 0)),
            pl.BlockSpec((B, H), lambda t: (0, 0)),
            pl.BlockSpec((B, H), lambda t: (0, 0)),
        ],
        scratch_shapes=[
            pltpu.VMEM((B, H), jnp.float32),   # running h (carried across chunks)
            pltpu.VMEM((B, H), jnp.float32),   # running c
        ],
    )

    h_seq, hT, cT = pl.pallas_call(
        kernel,
        out_shape=out_shapes,
        grid_spec=grid_spec,
        compiler_params=pltpu.CompilerParams(
            dimension_semantics=("arbitrary",)),  # recurrence => sequential grid
    )(gates_x, h0, c0, w_hh_t)

    if masked:
        h_seq = h_seq[:T]
    return h_seq, hT, cT


# ------------------------------ Model wrapper --------------------------------
class LanguageModelPallas:
    def __init__(self, vocab_size, embedding_size, hidden_size, n_layers=1,
                 dropout_p=0.25, key=None):
        assert n_layers == 1, "kernel implements the n_layers=1 case"
        self.vocab_size = vocab_size
        self.embedding_size = embedding_size
        self.hidden_size = hidden_size
        self.n_layers = n_layers
        self.dropout_p = dropout_p  # unused in eval-mode forward

        k = key if key is not None else jax.random.PRNGKey(0)
        k_emb, k_wih, k_whh, k_bih, k_bhh, k_lin = jax.random.split(k, 6)

        H, E, V = hidden_size, embedding_size, vocab_size
        s = 1.0 / jnp.sqrt(H)  # PyTorch LSTM default init range
        self.embed_w = jax.random.normal(k_emb, (V, E), jnp.float32) * 0.1
        self.w_ih = jax.random.uniform(k_wih, (4 * H, E), jnp.float32, -s, s)
        self.w_hh = jax.random.uniform(k_whh, (4 * H, H), jnp.float32, -s, s)
        self.b_ih = jax.random.uniform(k_bih, (4 * H,), jnp.float32, -s, s)
        self.b_hh = jax.random.uniform(k_bhh, (4 * H,), jnp.float32, -s, s)
        lim = jnp.sqrt(6.0 / (H + V))  # xavier_uniform for linear weight
        self.lin_w = jax.random.uniform(k_lin, (V, H), jnp.float32, -lim, lim)
        self.lin_b = jnp.zeros((V,), jnp.float32)

        # Pre-transposed weights / folded bias (hoisted out of all kernels).
        self.w_ih_t = jnp.transpose(self.w_ih)                 # (E, 4H)
        self.w_hh_t = jnp.transpose(self.w_hh)                 # (H, 4H)
        self.gate_bias = (self.b_ih + self.b_hh).reshape(1, 4 * H)
        self.lin_w_t = jnp.transpose(self.lin_w)               # (H, V)
        self.lin_b2 = self.lin_b.reshape(1, -1)                # (1, V)

    def init_hidden(self, batch_size):
        h = jnp.zeros((self.n_layers, batch_size, self.hidden_size), jnp.float32)
        c = jnp.zeros((self.n_layers, batch_size, self.hidden_size), jnp.float32)
        return (h, c)

    def __call__(self, inputs, hidden, is_training=False):
        # inputs: (B, T) int32; hidden: tuple of (1, B, H)
        B, T = inputs.shape
        H, E = self.hidden_size, self.embedding_size

        # Embedding lookup directly into time-major layout (gather of transposed
        # indices; avoids a full-array HBM transpose of the embeddings).
        embeds_tm = jnp.take(self.embed_w, jnp.transpose(inputs), axis=0)  # (T, B, E)
        # TODO(synk): dropout (is_training=True path) not implemented in-kernel.

        # Hoisted input projection for ALL timesteps: one tiled matmul.
        gates_x = matmul_bias(embeds_tm.reshape(T * B, E),
                              self.w_ih_t, self.gate_bias)      # (T*B, 4H)
        gates_x = gates_x.reshape(T, B, 4 * H)

        h0, c0 = hidden[0][0], hidden[1][0]                     # (B, H)
        h_seq, hT, cT = lstm_recurrence(gates_x, h0, c0, self.w_hh_t)

        # Batch-first flatten to match out.contiguous().view(B*T, -1).
        out_bf = jnp.transpose(h_seq, (1, 0, 2)).reshape(B * T, H)
        logits = matmul_bias(out_bf, self.lin_w_t, self.lin_b2)  # (B*T, V)

        new_hidden = (hT[None], cT[None])                        # (1, B, H) each
        return logits, new_hidden


# ---------------------------- Pure-JAX reference -----------------------------
def _reference_forward(model, inputs, hidden):
    B, T = inputs.shape
    H = model.hidden_size
    embeds = jnp.take(model.embed_w, inputs, axis=0)
    h0, c0 = hidden[0][0], hidden[1][0]
    wih_t, whh_t = jnp.transpose(model.w_ih), jnp.transpose(model.w_hh)
    b = model.b_ih + model.b_hh

    def step(carry, x_t):
        h, c = carry
        gates = x_t @ wih_t + h @ whh_t + b
        i = jax.nn.sigmoid(gates[:, 0 * H:1 * H])
        f = jax.nn.sigmoid(gates[:, 1 * H:2 * H])
        g = jnp.tanh(gates[:, 2 * H:3 * H])
        o = jax.nn.sigmoid(gates[:, 3 * H:4 * H])
        c = f * c + i * g
        h = o * jnp.tanh(c)
        return (h, c), h

    (hT, cT), hs = jax.lax.scan(step, (h0, c0), jnp.transpose(embeds, (1, 0, 2)))
    out = jnp.transpose(hs, (1, 0, 2)).reshape(B * T, H)
    logits = out @ model.lin_w.T + model.lin_b
    return logits, (hT[None], cT[None])


if __name__ == "__main__":
    vocab_size, embedding_size, hidden_size = 128, 32, 32
    B, T = 2, 8

    model = LanguageModelPallas(vocab_size, embedding_size, hidden_size,
                                key=jax.random.PRNGKey(0))

    key = jax.random.PRNGKey(0)
    tokens = jax.random.randint(key, (B, T), 0, vocab_size, dtype=jnp.int32)
    hidden = model.init_hidden(B)

    logits, (h_out, c_out) = model(tokens, hidden, is_training=False)
    jax.block_until_ready(logits)
    jax.block_until_ready(h_out)
    jax.block_until_ready(c_out)

    # Self-check against a pure-JAX reference.
    ref_logits, (ref_h, ref_c) = _reference_forward(model, tokens, hidden)
    assert logits.shape == (B * T, vocab_size)
    assert h_out.shape == (1, B, hidden_size) and c_out.shape == (1, B, hidden_size)
    assert jnp.allclose(logits, ref_logits, atol=1e-4)
    assert jnp.allclose(h_out, ref_h, atol=1e-4)
    assert jnp.allclose(c_out, ref_c, atol=1e-4)

    print("KERNEL_OK")
</pallas_src>

<mosaic_0001>
module attributes {stable_mosaic.version = 11 : i64} {
  func.func @_matmul_bias_kernel(%arg0: i32, %arg1: i32, %arg2: memref<16x32xf32, #tpu.memory_space<vmem>>, %arg3: memref<32x128xf32, #tpu.memory_space<vmem>>, %arg4: memref<1x128xf32, #tpu.memory_space<vmem>>, %arg5: memref<16x128xf32, #tpu.memory_space<vmem>>) attributes {dimension_semantics = [#tpu.dimension_semantics<parallel>, #tpu.dimension_semantics<parallel>], iteration_bounds = array<i64: 1, 1>, scalar_prefetch = 0 : i64, scratch_operands = 0 : i64, tpu.core_type = #tpu.core_type<tc>, window_params = [{transform_indices = @transform_0, window_bounds = array<i64: 16, 32>}, {transform_indices = @transform_1, window_bounds = array<i64: 32, 128>}, {transform_indices = @transform_2, window_bounds = array<i64: 1, 128>}, {transform_indices = @transform_3, window_bounds = array<i64: 16, 128>}]} {
    %c0 = arith.constant 0 : index
    %c0_0 = arith.constant 0 : index
    %0 = vector.load %arg2[%c0, %c0_0] : memref<16x32xf32, #tpu.memory_space<vmem>>, vector<16x32xf32>
    %c0_1 = arith.constant 0 : index
    %c0_2 = arith.constant 0 : index
    %1 = vector.load %arg3[%c0_1, %c0_2] : memref<32x128xf32, #tpu.memory_space<vmem>>, vector<32x128xf32>
    %cst = arith.constant dense<0.000000e+00> : vector<16x128xf32>
    %2 = tpu.matmul %0, %1, %cst {dimension_numbers = #tpu.dot_dimension_numbers<[1], [0], [0], [1], [0, 0, 1, 1], [], []>} : vector<16x32xf32>, vector<32x128xf32>, vector<16x128xf32> -> vector<16x128xf32>
    %c0_3 = arith.constant 0 : index
    %c0_4 = arith.constant 0 : index
    %3 = vector.load %arg4[%c0_3, %c0_4] : memref<1x128xf32, #tpu.memory_space<vmem>>, vector<1x128xf32>
    %4 = vector.broadcast %3 : vector<1x128xf32> to vector<16x128xf32>
    %5 = arith.addf %2, %4 : vector<16x128xf32>
    %c0_5 = arith.constant 0 : index
    %c0_6 = arith.constant 0 : index
    %6 = vector.load %arg5[%c0_5, %c0_6] : memref<16x128xf32, #tpu.memory_space<vmem>>, vector<16x128xf32>
    tpu.vector_store %arg5[%c0_5, %c0_6], %5 {strides = array<i32>} : memref<16x128xf32, #tpu.memory_space<vmem>>, vector<16x128xf32>,
    return
  }
  func.func @transform_0(%arg0: i32, %arg1: i32) -> (i32, i32) {
    %c0_i32 = arith.constant 0 : i32
    %c0_i32_0 = arith.constant 0 : i32
    return %arg0, %c0_i32 : i32, i32
  }
  func.func @transform_1(%arg0: i32, %arg1: i32) -> (i32, i32) {
    %c0_i32 = arith.constant 0 : i32
    %c0_i32_0 = arith.constant 0 : i32
    return %c0_i32, %arg1 : i32, i32
  }
  func.func @transform_2(%arg0: i32, %arg1: i32) -> (i32, i32) {
    %c0_i32 = arith.constant 0 : i32
    %c0_i32_0 = arith.constant 0 : i32
    return %c0_i32, %arg1 : i32, i32
  }
  func.func @transform_3(%arg0: i32, %arg1: i32) -> (i32, i32) {
    %c0_i32 = arith.constant 0 : i32
    return %arg0, %arg1 : i32, i32
  }
}

</mosaic_0001>

<llo_original>
// kernel: tpu_custom_call.1
$region0: #{tpu_custom_call.1}
  #allocation0 [shape = 'u32[]', space=smem, size = 0x4, offset = 0x4, fixed_abs, tag = 'smem constant byte address 0x4 - core index']
  #allocation1 [shape = 'u32[72,128]{1,0:T(1,128)}', space=vmem, size = 0x9000, scoped, tag = 'internal scratch']
  %s0 = inlined_call_operand.hbm [shape: f32[16,32], index: 0, kind: input, shape index: {}]
  %s1 = inlined_call_operand.hbm [shape: f32[32,128], index: 1, kind: input, shape index: {}]
  %s2 = inlined_call_operand.vmem [shape: f32[1,128], index: 2, kind: input, shape index: {}]
  %s3 = inlined_call_operand.hbm [shape: f32[16,128], index: 3, kind: output, shape index: {}]
  %s4 = sld [smem:[#allocation0]]
  $region30: #{tpu_custom_call.1} parent=0
    _
  %s6 = ssub.s32 1, %s4
  %s7 = scalar_select 0, %s6, %s4
  $region1: #{tpu_custom_call.1} parent=0
    #allocation2 [shape = 'u8[8192]{0}', space=vmem, size = 0x2000, scoped, tag = 'input window, operand 0, single buffered']
    #allocation3 [shape = 's32[1]{0}', space=sflag, size = 0x4, scoped, tag = 'scoped memory for tpu_custom_call.1']
    #allocation4 [shape = 's32[1]{0}', space=sflag, size = 0x4, scoped, tag = 'scoped memory for tpu_custom_call.1']
    #allocation5 [shape = 'u8[16384]{0}', space=vmem, size = 0x4000, scoped, tag = 'input window, operand 1, single buffered']
    #allocation6 [shape = 's32[1]{0}', space=sflag, size = 0x4, scoped, tag = 'scoped memory for tpu_custom_call.1']
    #allocation7 [shape = 'u8[8192]{0}', space=vmem, size = 0x2000, scoped, tag = 'output window, operand 0, single buffered']
    %8 = vsyncpa [#allocation3], 0
    %9 = vsyncpa [#allocation6], 0
    %10 = vsyncpa [#allocation4], 0
    // Predicated region
    $region2: #{tpu_custom_call.1} parent=1 // pred_check
      _
    $region3: #{tpu_custom_call.1} parent=1 // pred_check_branch
      %12 = sbr.rel (0) target = $region5
    $region4: #{tpu_custom_call.1} parent=1 // pred_region
      %14 = vsyncadd [#allocation3], 0
      %s15 = sshll.u32 %s0, 4
      %s16 = int_to_ptr.hbm [resolvable:$true] %s15
      %s17 = sshll.u32 [#allocation2], 4
      %s18 = int_to_ptr.vmem [resolvable:$true] %s17
      %23 = dma.hbm_to_vmem [thread:$0]  %s16, 256, %s18, [#allocation3], 128, 128, 8
    $region5: #{tpu_custom_call.1} parent=1 // pred_fallthru
      _
    // Predicated region
    $region6: #{tpu_custom_call.1} parent=1 // pred_check
      _
    $region7: #{tpu_custom_call.1} parent=1 // pred_check_branch
      %25 = sbr.rel (0) target = $region9
    $region8: #{tpu_custom_call.1} parent=1 // pred_region
      %27 = vsyncadd [#allocation6], 0
      %s28 = sshll.u32 %s1, 4
      %s29 = int_to_ptr.hbm [resolvable:$true] %s28
      %s30 = sshll.u32 [#allocation5], 4
      %s31 = int_to_ptr.vmem [resolvable:$true] %s30
      %36 = dma.hbm_to_vmem [thread:$0]  %s29, 512, %s31, [#allocation6], 128, 128, 8
    $region9: #{tpu_custom_call.1} parent=1 // pred_fallthru
      _
    // Predicated region
    $region10: #{tpu_custom_call.1} parent=1 // pred_check
      _
    $region11: #{tpu_custom_call.1} parent=1 // pred_check_branch
      %38 = sbr.rel (0) target = $region13
    $region12: #{tpu_custom_call.1} parent=1 // pred_region
      _
    $region13: #{tpu_custom_call.1} parent=1 // pred_fallthru
      _
    // Predicated region
    $region14: #{tpu_custom_call.1} parent=1 // pred_check
      _
    $region15: #{tpu_custom_call.1} parent=1 // pred_check_branch
      %40 = sbr.rel (0) target = $region17
    $region16: #{tpu_custom_call.1} parent=1 // pred_region
      %42 = dma.done [#allocation3], 256
    $region17: #{tpu_custom_call.1} parent=1 // pred_fallthru
      _
    // Predicated region
    $region18: #{tpu_custom_call.1} parent=1 // pred_check
      _
    $region19: #{tpu_custom_call.1} parent=1 // pred_check_branch
      %44 = sbr.rel (0) target = $region21
    $region20: #{tpu_custom_call.1} parent=1 // pred_region
      %46 = dma.done [#allocation6], 512
    $region21: #{tpu_custom_call.1} parent=1 // pred_fallthru
      _
    %v47 = vld [vmem:[#allocation2] sm:$0xff]
    %v48 = vld [vmem:[#allocation2 + $0x8] sm:$0xff]
    %v49 = vld [vmem:[#allocation5] sm:$0xff]
    %v50 = vld [vmem:[#allocation5 + $0x8] sm:$0xff]
    %v51 = vld [vmem:[#allocation5 + $0x10] sm:$0xff]
    %v52 = vld [vmem:[#allocation5 + $0x18] sm:$0xff]
    %v53 = vld [vmem:[%s2] sm:$0x1]
    %v55 = vperm.slane %v53, 0
    %vm57 = vcmask 261120
    %v59 = vsel %vm57, %v47, 0
    %v62 = vsel %vm57, %v48, 0
    %64 = vmatpush.msra.mxu0 0.0
    %65 = vmatpush.msra.mxu0 0.0
    %66 = vmatpush.msra.mxu0 0.0
    %67 = vmatpush.msra.mxu0 0.0
    %68 = vmatpush.msra.mxu0 0.0
    %69 = vmatpush.msra.mxu0 0.0
    %70 = vmatpush.msra.mxu0 0.0
    %71 = vmatpush.msra.mxu0 0.0
    %72 = vmatpush.msra.mxu0 0.0
    %73 = vmatpush.msra.mxu0 0.0
    %74 = vmatpush.msra.mxu0 0.0
    %75 = vmatpush.msra.mxu0 0.0
    %76 = vmatpush.msra.mxu0 %v52
    %77 = vmatpush.msra.mxu0 %v51
    %78 = vmatpush.msra.mxu0 %v50
    %79 = vmatpush.msra.mxu0 %v49
    %80 = vmatmul.f32.gmra.mxu0 %v59
    %v81 = vpop.f32.mrf.mxu0
    %v82 = vadd.f32 %v55, %v81
    %83 = vmatmul.f32.gmra.mxu0 %v62
    %v84 = vpop.f32.mrf.mxu0
    %v85 = vadd.f32 %v55, %v84
    %86 = vdwg.mxu0
    %87 = vst [vmem:[#allocation7] sm:$0xff] %v82
    %88 = vst [vmem:[#allocation7 + $0x8] sm:$0xff] %v85
    // Predicated region
    $region22: #{tpu_custom_call.1} parent=1 // pred_check
      _
    $region23: #{tpu_custom_call.1} parent=1 // pred_check_branch
      %90 = sbr.rel (0) target = $region25
    $region24: #{tpu_custom_call.1} parent=1 // pred_region
      %92 = vsyncadd [#allocation4], 0
      %s93 = sshll.u32 [#allocation7], 4
      %s94 = int_to_ptr.vmem [resolvable:$true] %s93
      %s95 = sshll.u32 %s3, 4
      %s96 = int_to_ptr.hbm [resolvable:$true] %s95
      %101 = dma.vmem_to_hbm [thread:$0]  %s94, 256, %s96, [#allocation4], 128, 128, 8
    $region25: #{tpu_custom_call.1} parent=1 // pred_fallthru
      _
    // Predicated region
    $region26: #{tpu_custom_call.1} parent=1 // pred_check
      _
    $region27: #{tpu_custom_call.1} parent=1 // pred_check_branch
      %103 = sbr.rel (0) target = $region29
    $region28: #{tpu_custom_call.1} parent=1 // pred_region
      %105 = dma.done [#allocation4], 256
    $region29: #{tpu_custom_call.1} parent=1 // pred_fallthru
      _
    %106 = vsyncpa [#allocation3], 1
    %107 = vsyncpa [#allocation6], 1
    %108 = vsyncpa [#allocation4], 1

</llo_original>
